<compile_context>
chip_gen: v7x
topology: tpu7x:2x2x1
jax: 0.10.0
libtpu: 0.0.40
codegen_flags: <defaults>
</compile_context>

<pallas_src>
import math
import numpy as np
import jax
import jax.numpy as jnp
from jax.experimental import pallas as pl
from jax.experimental.pallas import tpu as pltpu

# ----- model hyperparameters (small, consistent with the module) -----
B = 2           # batch
S = 8           # sequence length
D_MODEL = 32    # d_model
NUM_HEADS = 4
HEAD_DIM = D_MODEL // NUM_HEADS
FF_DIM = 64
LN_EPS = 1e-5

# bf16 matmul operands on v5e/v6e/v7x (full-rate MXU); f32 accumulation kept via
# preferred_element_type, and all elementwise / softmax / LayerNorm math stays f32.
MATMUL_DTYPE = jnp.bfloat16

assert S & (S - 1) == 0, "in-kernel batch-id uses a shift; S must be a power of two"
_SEQ_SHIFT = int(math.log2(S))


def _layernorm(x, w, b, eps=LN_EPS):
    # Two-pass (centered) variance: robust against cancellation; compute slack makes it free.
    mu = jnp.mean(x, axis=-1, keepdims=True)
    xc = x - mu
    var = jnp.mean(xc * xc, axis=-1, keepdims=True)
    return xc * jax.lax.rsqrt(var + eps) * w + b


def _gelu_exact(x):
    # PyTorch nn.GELU() default = exact erf formulation.
    return 0.5 * x * (1.0 + jax.lax.erf(x * (1.0 / math.sqrt(2.0))))


def transformer_block_kernel(
    x_ref,      # (N, D)        f32, N = B*S flattened rows
    wqkv_ref,   # (H, D, 3*hd)  bf16, Q columns pre-scaled by 1/sqrt(hd)
    wproj_ref,  # (H, hd, D)    bf16
    wfc1_ref,   # (D, F)        bf16
    wfc2_ref,   # (F, D)        bf16
    vec_ref,    # (6, max(F,D)) f32: rows = ln1.w, ln1.b, ln2.w, ln2.b, fc1.b, fc2.b (lane-padded)
    o_ref,      # (N, D)        f32
):
    f32 = jnp.float32
    mm = MATMUL_DTYPE
    n, d = x_ref.shape
    h, hd, _ = wproj_ref.shape
    f = wfc1_ref.shape[1]

    x = x_ref[...].astype(f32)                                            # (N, D)

    # ---- CausalSelfAttention (eval mode: non-causal, no dropout) ----
    # Fused QKV projection: one batched matmul over the head axis (hoisted broadcast of x).
    xh = jnp.broadcast_to(x.astype(mm)[None], (h, n, d))                  # (H, N, D)
    qkv = jnp.einsum('hnd,hdk->hnk', xh, wqkv_ref[...],
                     preferred_element_type=f32)                          # (H, N, 3*hd)
    q = qkv[:, :, 0:hd]              # softmax scale already folded into the Q weight columns
    k = qkv[:, :, hd:2 * hd]
    v = qkv[:, :, 2 * hd:3 * hd]

    s = jnp.einsum('hqd,hkd->hqk', q.astype(mm), k.astype(mm),
                   preferred_element_type=f32)                            # (H, N, N)

    # Block-diagonal batch mask generated in-kernel (batch dim is fused into the row dim,
    # so the softmax must not mix rows from different batch elements). Zero bytes of DMA.
    row = jax.lax.broadcasted_iota(jnp.int32, (n, n), 0)
    col = jax.lax.broadcasted_iota(jnp.int32, (n, n), 1)
    same_batch = (jax.lax.shift_right_logical(row, _SEQ_SHIFT)
                  == jax.lax.shift_right_logical(col, _SEQ_SHIFT))
    s = jnp.where(same_batch[None], s, -1e30)                             # mask applied in f32

    # Row softmax, exact divide (approx reciprocal dropped: free accuracy at this size).
    s = s - jnp.max(s, axis=-1, keepdims=True)
    p = jnp.exp(s)
    p = p / jnp.sum(p, axis=-1, keepdims=True)

    y = jnp.einsum('hqk,hkd->hqd', p.astype(mm), v.astype(mm),
                   preferred_element_type=f32)                            # (H, N, hd)
    # Per-head slice of the output projection, reduced over heads (replaces concat + (N,D)@(D,D)).
    # Kept as the proven batched-matmul + sum form; at scale on v7x the single contraction
    # 'hnd,hdk->nk' would absorb the head reduction into the MRB.
    attn = jnp.sum(
        jnp.einsum('hnd,hdk->hnk', y.astype(mm), wproj_ref[...],
                   preferred_element_type=f32),
        axis=0)                                                           # (N, D)

    # ---- unpack the packed vector table ----
    ln1w = vec_ref[0:1, 0:d]
    ln1b = vec_ref[1:2, 0:d]
    ln2w = vec_ref[2:3, 0:d]
    ln2b = vec_ref[3:4, 0:d]
    bfc1 = vec_ref[4:5, 0:f]
    bfc2 = vec_ref[5:6, 0:d]

    # ---- x + dropout(attn); ln1   (dropout = identity in eval) ----
    x1 = _layernorm(x + attn, ln1w, ln1b)

    # ---- MLP: Linear -> GELU(exact) -> Linear ----
    h1 = jnp.dot(x1.astype(mm), wfc1_ref[...], preferred_element_type=f32) + bfc1
    h1 = _gelu_exact(h1)
    h2 = jnp.dot(h1.astype(mm), wfc2_ref[...], preferred_element_type=f32) + bfc2

    # ---- x + dropout(ff); ln2 ----
    x2 = _layernorm(x1 + h2, ln2w, ln2b)
    # TODO(synk): D_MODEL=32 makes this a masked 32/128-lane store; durable fix when scaling
    # the model is d_model as a multiple of 128 (and a row-tiled "parallel" grid for v7x).
    o_ref[...] = x2.astype(o_ref.dtype)


def transformer_block(x, params):
    (wqkv, wproj, ln1w, ln1b, wfc1, bfc1, wfc2, bfc2, ln2w, ln2b) = params
    bb, ss, dd = x.shape
    n = bb * ss

    # Free, HBM-level re-layouts done OUTSIDE the kernel (no in-kernel relayout of weights):
    x2d = x.reshape(n, dd)

    wq, wk, wv = jnp.split(wqkv, 3, axis=1)                                      # (D, D) each
    to_heads = lambda w: w.reshape(dd, NUM_HEADS, HEAD_DIM).transpose(1, 0, 2)   # (H, D, hd)
    # Fold the 1/sqrt(head_dim) softmax scale into the Q weight columns, fuse Q|K|V along
    # the last axis, and pre-cast matmul weights to bf16 (halves their DMA bytes).
    wqkv_h = jnp.concatenate(
        [to_heads(wq) * (1.0 / math.sqrt(HEAD_DIM)), to_heads(wk), to_heads(wv)],
        axis=-1).astype(MATMUL_DTYPE)                                            # (H, D, 3*hd)
    wproj_h = wproj.reshape(NUM_HEADS, HEAD_DIM, dd).astype(MATMUL_DTYPE)        # (H, hd, D)
    wfc1_mm = wfc1.astype(MATMUL_DTYPE)                                          # (D, F)
    wfc2_mm = wfc2.astype(MATMUL_DTYPE)                                          # (F, D)

    # Pack all tiny per-feature vectors into one padded f32 table: fewer refs / DMA descriptors.
    maxw = max(FF_DIM, dd)
    pad_row = lambda v: jnp.pad(v, ((0, 0), (0, maxw - v.shape[1])))
    vec_tab = jnp.concatenate(
        [pad_row(ln1w), pad_row(ln1b), pad_row(ln2w), pad_row(ln2b),
         pad_row(bfc1), pad_row(bfc2)], axis=0).astype(jnp.float32)              # (6, maxw)

    vmem = pl.BlockSpec(memory_space=pltpu.MemorySpace.VMEM)
    out = pl.pallas_call(
        transformer_block_kernel,
        out_shape=jax.ShapeDtypeStruct((n, dd), jnp.float32),
        in_specs=[vmem] * 6,
        out_specs=vmem,
        # Single grid step: everything VMEM-resident; no grid / dimension_semantics needed.
        # When scaling up, add a row-tiled grid axis marked "parallel" (v7x: 2 TensorCores)
        # and re-derive the VMEM budget for 64 MiB.
    )(x2d, wqkv_h, wproj_h, wfc1_mm, wfc2_mm, vec_tab)
    return out.reshape(bb, ss, dd)


# ---------------- pure-JAX reference (independent, f32 throughout) ----------------
def _layernorm_ref(x, w, b, eps=LN_EPS):
    mu = jnp.mean(x, axis=-1, keepdims=True)
    var = jnp.mean((x - mu) ** 2, axis=-1, keepdims=True)
    return (x - mu) * jax.lax.rsqrt(var + eps) * w + b


def reference_block(x, params):
    (wqkv, wproj, ln1w, ln1b, wfc1, bfc1, wfc2, bfc2, ln2w, ln2b) = params
    qkv = x @ wqkv
    q, k, v = jnp.split(qkv, 3, axis=-1)

    def split_heads(t):  # (B,S,D) -> (B,H,S,hd)
        return t.reshape(B, S, NUM_HEADS, HEAD_DIM).transpose(0, 2, 1, 3)

    qh, kh, vh = split_heads(q), split_heads(k), split_heads(v)
    s = jnp.einsum('bhqd,bhkd->bhqk', qh, kh) / math.sqrt(HEAD_DIM)
    p = jax.nn.softmax(s, axis=-1)
    y = jnp.einsum('bhqk,bhkd->bhqd', p, vh)
    y = y.transpose(0, 2, 1, 3).reshape(B, S, D_MODEL)
    y = y @ wproj

    x1 = _layernorm_ref(x + y, ln1w[0], ln1b[0])
    h = _gelu_exact(x1 @ wfc1 + bfc1[0])
    h = h @ wfc2 + bfc2[0]
    return _layernorm_ref(x1 + h, ln2w[0], ln2b[0])


def init_params(key):
    ks = jax.random.split(key, 6)
    scale = 0.05
    wqkv = scale * jax.random.normal(ks[0], (D_MODEL, 3 * D_MODEL), jnp.float32)
    wproj = scale * jax.random.normal(ks[1], (D_MODEL, D_MODEL), jnp.float32)
    wfc1 = scale * jax.random.normal(ks[2], (D_MODEL, FF_DIM), jnp.float32)
    bfc1 = scale * jax.random.normal(ks[3], (1, FF_DIM), jnp.float32)
    wfc2 = scale * jax.random.normal(ks[4], (FF_DIM, D_MODEL), jnp.float32)
    bfc2 = scale * jax.random.normal(ks[5], (1, D_MODEL), jnp.float32)
    # LayerNorm default init: weight = 1, bias = 0
    ln1w = jnp.ones((1, D_MODEL), jnp.float32)
    ln1b = jnp.zeros((1, D_MODEL), jnp.float32)
    ln2w = jnp.ones((1, D_MODEL), jnp.float32)
    ln2b = jnp.zeros((1, D_MODEL), jnp.float32)
    return (wqkv, wproj, ln1w, ln1b, wfc1, bfc1, wfc2, bfc2, ln2w, ln2b)


if __name__ == "__main__":
    key = jax.random.PRNGKey(0)
    kx, kp = jax.random.split(key)
    x = jax.random.normal(kx, (B, S, D_MODEL), jnp.float32)
    params = init_params(kp)

    out = jax.block_until_ready(transformer_block(x, params))
    ref = reference_block(x, params)

    # Tolerance reflects bf16 matmul operands (per review); softmax divide is exact, mask,
    # softmax, LayerNorm and residuals are f32, and accumulation is f32 throughout.
    np.testing.assert_allclose(np.asarray(out), np.asarray(ref), atol=2e-2, rtol=2e-2)

    print("KERNEL_OK")
</pallas_src>

<mosaic_0001>
module attributes {stable_mosaic.version = 11 : i64} {
  func.func @transformer_block_kernel(%arg0: memref<16x32xf32, #tpu.memory_space<vmem>>, %arg1: memref<4x32x24xbf16, #tpu.memory_space<vmem>>, %arg2: memref<4x8x32xbf16, #tpu.memory_space<vmem>>, %arg3: memref<32x64xbf16, #tpu.memory_space<vmem>>, %arg4: memref<64x32xbf16, #tpu.memory_space<vmem>>, %arg5: memref<6x64xf32, #tpu.memory_space<vmem>>, %arg6: memref<16x32xf32, #tpu.memory_space<vmem>>) attributes {dimension_semantics = [], scalar_prefetch = 0 : i64, scratch_operands = 0 : i64, tpu.core_type = #tpu.core_type<tc>} {
    %c0 = arith.constant 0 : index
    %c0_0 = arith.constant 0 : index
    %0 = vector.load %arg0[%c0, %c0_0] : memref<16x32xf32, #tpu.memory_space<vmem>>, vector<16x32xf32>
    %1 = arith.truncf %0 : vector<16x32xf32> to vector<16x32xbf16>
    %2 = vector.shape_cast %1 : vector<16x32xbf16> to vector<1x16x32xbf16>
    %3 = vector.shape_cast %2 : vector<1x16x32xbf16> to vector<1x16x32xbf16>
    %4 = vector.broadcast %3 : vector<1x16x32xbf16> to vector<4x16x32xbf16>
    %c0_1 = arith.constant 0 : index
    %c0_2 = arith.constant 0 : index
    %c0_3 = arith.constant 0 : index
    %5 = vector.load %arg1[%c0_1, %c0_2, %c0_3] : memref<4x32x24xbf16, #tpu.memory_space<vmem>>, vector<4x32x24xbf16>
    "tpu.trace_start"() <{level = 10 : i32, message = "hnd,hdk->hnk"}> : () -> ()
    %cst = arith.constant dense<0.000000e+00> : vector<4x16x24xf32>
    %6 = tpu.matmul %4, %5, %cst {dimension_numbers = #tpu.dot_dimension_numbers<[2], [1], [1], [2], [0, 0, 0, 1, 1, 2], [0], [0]>} : vector<4x16x32xbf16>, vector<4x32x24xbf16>, vector<4x16x24xf32> -> vector<4x16x24xf32>
    "tpu.trace_stop"() : () -> ()
    %7 = vector.extract_strided_slice %6 {offsets = [0, 0, 0], sizes = [4, 16, 8], strides = [1, 1, 1]} : vector<4x16x24xf32> to vector<4x16x8xf32>
    %8 = vector.extract_strided_slice %6 {offsets = [0, 0, 8], sizes = [4, 16, 8], strides = [1, 1, 1]} : vector<4x16x24xf32> to vector<4x16x8xf32>
    %9 = vector.extract_strided_slice %6 {offsets = [0, 0, 16], sizes = [4, 16, 8], strides = [1, 1, 1]} : vector<4x16x24xf32> to vector<4x16x8xf32>
    %10 = arith.truncf %7 : vector<4x16x8xf32> to vector<4x16x8xbf16>
    %11 = arith.truncf %8 : vector<4x16x8xf32> to vector<4x16x8xbf16>
    "tpu.trace_start"() <{level = 10 : i32, message = "hqd,hkd->hqk"}> : () -> ()
    %cst_4 = arith.constant dense<0.000000e+00> : vector<4x16x16xf32>
    %12 = tpu.matmul %10, %11, %cst_4 {dimension_numbers = #tpu.dot_dimension_numbers<[2], [2], [1], [1], [0, 0, 0, 1, 1, 1], [0], [0]>} : vector<4x16x8xbf16>, vector<4x16x8xbf16>, vector<4x16x16xf32> -> vector<4x16x16xf32>
    "tpu.trace_stop"() : () -> ()
    %13 = tpu.iota {dimensions = array<i32: 0>} : vector<16x16xi32>
    %14 = tpu.iota {dimensions = array<i32: 1>} : vector<16x16xi32>
    %c3_i32 = arith.constant 3 : i32
    %15 = vector.broadcast %c3_i32 : i32 to vector<16x16xi32>
    %16 = arith.shrui %13, %15 : vector<16x16xi32>
    %c3_i32_5 = arith.constant 3 : i32
    %17 = vector.broadcast %c3_i32_5 : i32 to vector<16x16xi32>
    %18 = arith.shrui %14, %17 : vector<16x16xi32>
    %19 = arith.cmpi eq, %16, %18 : vector<16x16xi32>
    %20 = vector.shape_cast %19 : vector<16x16xi1> to vector<1x16x16xi1>
    %cst_6 = arith.constant -1.000000e+30 : f32
    %21 = vector.shape_cast %20 : vector<1x16x16xi1> to vector<1x16x16xi1>
    %22 = vector.broadcast %21 : vector<1x16x16xi1> to vector<4x16x16xi1>
    %23 = vector.broadcast %cst_6 : f32 to vector<4x16x16xf32>
    %24 = arith.select %22, %12, %23 : vector<4x16x16xi1>, vector<4x16x16xf32>
    %cst_7 = arith.constant dense<0xFF800000> : vector<4x16xf32>
    %25 = vector.multi_reduction <maximumf>, %24, %cst_7 [2] : vector<4x16x16xf32> to vector<4x16xf32>
    %26 = vector.shape_cast %25 : vector<4x16xf32> to vector<4x16x1xf32>
    %27 = vector.broadcast %26 : vector<4x16x1xf32> to vector<4x16x16xf32>
    %28 = arith.subf %24, %27 : vector<4x16x16xf32>
    %29 = math.exp %28 : vector<4x16x16xf32>
    %cst_8 = arith.constant dense<0.000000e+00> : vector<4x16xf32>
    %30 = vector.multi_reduction <add>, %29, %cst_8 [2] : vector<4x16x16xf32> to vector<4x16xf32>
    %31 = vector.shape_cast %30 : vector<4x16xf32> to vector<4x16x1xf32>
    %32 = vector.broadcast %31 : vector<4x16x1xf32> to vector<4x16x16xf32>
    %33 = arith.divf %29, %32 : vector<4x16x16xf32>
    %34 = arith.truncf %33 : vector<4x16x16xf32> to vector<4x16x16xbf16>
    %35 = arith.truncf %9 : vector<4x16x8xf32> to vector<4x16x8xbf16>
    "tpu.trace_start"() <{level = 10 : i32, message = "hqk,hkd->hqd"}> : () -> ()
    %cst_9 = arith.constant dense<0.000000e+00> : vector<4x16x8xf32>
    %36 = tpu.matmul %34, %35, %cst_9 {dimension_numbers = #tpu.dot_dimension_numbers<[2], [1], [1], [2], [0, 0, 0, 1, 1, 2], [0], [0]>} : vector<4x16x16xbf16>, vector<4x16x8xbf16>, vector<4x16x8xf32> -> vector<4x16x8xf32>
    "tpu.trace_stop"() : () -> ()
    %37 = arith.truncf %36 : vector<4x16x8xf32> to vector<4x16x8xbf16>
    %c0_10 = arith.constant 0 : index
    %c0_11 = arith.constant 0 : index
    %c0_12 = arith.constant 0 : index
    %38 = vector.load %arg2[%c0_10, %c0_11, %c0_12] : memref<4x8x32xbf16, #tpu.memory_space<vmem>>, vector<4x8x32xbf16>
    "tpu.trace_start"() <{level = 10 : i32, message = "hnd,hdk->hnk"}> : () -> ()
    %cst_13 = arith.constant dense<0.000000e+00> : vector<4x16x32xf32>
    %39 = tpu.matmul %37, %38, %cst_13 {dimension_numbers = #tpu.dot_dimension_numbers<[2], [1], [1], [2], [0, 0, 0, 1, 1, 2], [0], [0]>} : vector<4x16x8xbf16>, vector<4x8x32xbf16>, vector<4x16x32xf32> -> vector<4x16x32xf32>
    "tpu.trace_stop"() : () -> ()
    %cst_14 = arith.constant dense<0.000000e+00> : vector<16x32xf32>
    %40 = vector.multi_reduction <add>, %39, %cst_14 [0] : vector<4x16x32xf32> to vector<16x32xf32>
    %c0_15 = arith.constant 0 : index
    %c0_16 = arith.constant 0 : index
    %41 = vector.load %arg5[%c0_15, %c0_16] : memref<6x64xf32, #tpu.memory_space<vmem>>, vector<1x32xf32>
    %c1 = arith.constant 1 : index
    %c0_17 = arith.constant 0 : index
    %42 = vector.load %arg5[%c1, %c0_17] : memref<6x64xf32, #tpu.memory_space<vmem>>, vector<1x32xf32>
    %c2 = arith.constant 2 : index
    %c0_18 = arith.constant 0 : index
    %43 = vector.load %arg5[%c2, %c0_18] : memref<6x64xf32, #tpu.memory_space<vmem>>, vector<1x32xf32>
    %c3 = arith.constant 3 : index
    %c0_19 = arith.constant 0 : index
    %44 = vector.load %arg5[%c3, %c0_19] : memref<6x64xf32, #tpu.memory_space<vmem>>, vector<1x32xf32>
    %c4 = arith.constant 4 : index
    %c0_20 = arith.constant 0 : index
    %45 = vector.load %arg5[%c4, %c0_20] : memref<6x64xf32, #tpu.memory_space<vmem>>, vector<1x64xf32>
    %c5 = arith.constant 5 : index
    %c0_21 = arith.constant 0 : index
    %46 = vector.load %arg5[%c5, %c0_21] : memref<6x64xf32, #tpu.memory_space<vmem>>, vector<1x32xf32>
    %47 = arith.addf %0, %40 : vector<16x32xf32>
    %cst_22 = arith.constant dense<0.000000e+00> : vector<16xf32>
    %48 = vector.multi_reduction <add>, %47, %cst_22 [1] : vector<16x32xf32> to vector<16xf32>
    %49 = vector.shape_cast %48 : vector<16xf32> to vector<16x1xf32>
    %cst_23 = arith.constant 3.200000e+01 : f32
    %50 = vector.broadcast %cst_23 : f32 to vector<16x1xf32>
    %51 = arith.divf %49, %50 : vector<16x1xf32>
    %52 = vector.broadcast %51 : vector<16x1xf32> to vector<16x32xf32>
    %53 = arith.subf %47, %52 : vector<16x32xf32>
    %54 = arith.mulf %53, %53 : vector<16x32xf32>
    %cst_24 = arith.constant dense<0.000000e+00> : vector<16xf32>
    %55 = vector.multi_reduction <add>, %54, %cst_24 [1] : vector<16x32xf32> to vector<16xf32>
    %56 = vector.shape_cast %55 : vector<16xf32> to vector<16x1xf32>
    %cst_25 = arith.constant 3.200000e+01 : f32
    %57 = vector.broadcast %cst_25 : f32 to vector<16x1xf32>
    %58 = arith.divf %56, %57 : vector<16x1xf32>
    %cst_26 = arith.constant 9.99999974E-6 : f32
    %59 = vector.broadcast %cst_26 : f32 to vector<16x1xf32>
    %60 = arith.addf %58, %59 : vector<16x1xf32>
    %61 = math.rsqrt %60 : vector<16x1xf32>
    %62 = vector.broadcast %61 : vector<16x1xf32> to vector<16x32xf32>
    %63 = arith.mulf %53, %62 : vector<16x32xf32>
    %64 = vector.broadcast %41 : vector<1x32xf32> to vector<16x32xf32>
    %65 = arith.mulf %63, %64 : vector<16x32xf32>
    %66 = vector.broadcast %42 : vector<1x32xf32> to vector<16x32xf32>
    %67 = arith.addf %65, %66 : vector<16x32xf32>
    %68 = arith.truncf %67 : vector<16x32xf32> to vector<16x32xbf16>
    %c0_27 = arith.constant 0 : index
    %c0_28 = arith.constant 0 : index
    %69 = vector.load %arg3[%c0_27, %c0_28] : memref<32x64xbf16, #tpu.memory_space<vmem>>, vector<32x64xbf16>
    %cst_29 = arith.constant dense<0.000000e+00> : vector<16x64xf32>
    %70 = tpu.matmul %68, %69, %cst_29 {dimension_numbers = #tpu.dot_dimension_numbers<[1], [0], [0], [1], [0, 0, 1, 1], [], []>} : vector<16x32xbf16>, vector<32x64xbf16>, vector<16x64xf32> -> vector<16x64xf32>
    %71 = vector.broadcast %45 : vector<1x64xf32> to vector<16x64xf32>
    %72 = arith.addf %70, %71 : vector<16x64xf32>
    %cst_30 = arith.constant 5.000000e-01 : f32
    %73 = vector.broadcast %cst_30 : f32 to vector<16x64xf32>
    %74 = arith.mulf %73, %72 : vector<16x64xf32>
    %cst_31 = arith.constant 0.707106769 : f32
    %75 = vector.broadcast %cst_31 : f32 to vector<16x64xf32>
    %76 = arith.mulf %72, %75 : vector<16x64xf32>
    %77 = math.erf %76 : vector<16x64xf32>
    %cst_32 = arith.constant 1.000000e+00 : f32
    %78 = vector.broadcast %cst_32 : f32 to vector<16x64xf32>
    %79 = arith.addf %78, %77 : vector<16x64xf32>
    %80 = arith.mulf %74, %79 : vector<16x64xf32>
    %81 = arith.truncf %80 : vector<16x64xf32> to vector<16x64xbf16>
    %c0_33 = arith.constant 0 : index
    %c0_34 = arith.constant 0 : index
    %82 = vector.load %arg4[%c0_33, %c0_34] : memref<64x32xbf16, #tpu.memory_space<vmem>>, vector<64x32xbf16>
    %cst_35 = arith.constant dense<0.000000e+00> : vector<16x32xf32>
    %83 = tpu.matmul %81, %82, %cst_35 {dimension_numbers = #tpu.dot_dimension_numbers<[1], [0], [0], [1], [0, 0, 1, 1], [], []>} : vector<16x64xbf16>, vector<64x32xbf16>, vector<16x32xf32> -> vector<16x32xf32>
    %84 = vector.broadcast %46 : vector<1x32xf32> to vector<16x32xf32>
    %85 = arith.addf %83, %84 : vector<16x32xf32>
    %86 = arith.addf %67, %85 : vector<16x32xf32>
    %cst_36 = arith.constant dense<0.000000e+00> : vector<16xf32>
    %87 = vector.multi_reduction <add>, %86, %cst_36 [1] : vector<16x32xf32> to vector<16xf32>
    %88 = vector.shape_cast %87 : vector<16xf32> to vector<16x1xf32>
    %cst_37 = arith.constant 3.200000e+01 : f32
    %89 = vector.broadcast %cst_37 : f32 to vector<16x1xf32>
    %90 = arith.divf %88, %89 : vector<16x1xf32>
    %91 = vector.broadcast %90 : vector<16x1xf32> to vector<16x32xf32>
    %92 = arith.subf %86, %91 : vector<16x32xf32>
    %93 = arith.mulf %92, %92 : vector<16x32xf32>
    %cst_38 = arith.constant dense<0.000000e+00> : vector<16xf32>
    %94 = vector.multi_reduction <add>, %93, %cst_38 [1] : vector<16x32xf32> to vector<16xf32>
    %95 = vector.shape_cast %94 : vector<16xf32> to vector<16x1xf32>
    %cst_39 = arith.constant 3.200000e+01 : f32
    %96 = vector.broadcast %cst_39 : f32 to vector<16x1xf32>
    %97 = arith.divf %95, %96 : vector<16x1xf32>
    %cst_40 = arith.constant 9.99999974E-6 : f32
    %98 = vector.broadcast %cst_40 : f32 to vector<16x1xf32>
    %99 = arith.addf %97, %98 : vector<16x1xf32>
    %100 = math.rsqrt %99 : vector<16x1xf32>
    %101 = vector.broadcast %100 : vector<16x1xf32> to vector<16x32xf32>
    %102 = arith.mulf %92, %101 : vector<16x32xf32>
    %103 = vector.broadcast %43 : vector<1x32xf32> to vector<16x32xf32>
    %104 = arith.mulf %102, %103 : vector<16x32xf32>
    %105 = vector.broadcast %44 : vector<1x32xf32> to vector<16x32xf32>
    %106 = arith.addf %104, %105 : vector<16x32xf32>
    %c0_41 = arith.constant 0 : index
    %c0_42 = arith.constant 0 : index
    %107 = vector.load %arg6[%c0_41, %c0_42] : memref<16x32xf32, #tpu.memory_space<vmem>>, vector<16x32xf32>
    tpu.vector_store %arg6[%c0_41, %c0_42], %106 {strides = array<i32>} : memref<16x32xf32, #tpu.memory_space<vmem>>, vector<16x32xf32>,
    return
  }
}

</mosaic_0001>

<llo_original>
// kernel: tpu_custom_call.1
$region0: #{tpu_custom_call.1}
  #allocation0 [shape = 'u32[]', space=smem, size = 0x4, offset = 0x4, fixed_abs, tag = 'smem constant byte address 0x4 - core index']
  #allocation1 [shape = 'u32[144,128]{1,0:T(1,128)}', space=vmem, size = 0x12000, scoped, tag = 'internal scratch']
  %s0 = inlined_call_operand.vmem [shape: f32[16,32], index: 0, kind: input, shape index: {}]
  %s1 = inlined_call_operand.vmem [shape: bf16[4,32,24], index: 1, kind: input, shape index: {}]
  %s2 = inlined_call_operand.vmem [shape: bf16[4,8,32], index: 2, kind: input, shape index: {}]
  %s3 = inlined_call_operand.vmem [shape: bf16[32,64], index: 3, kind: input, shape index: {}]
  %s4 = inlined_call_operand.vmem [shape: bf16[64,32], index: 4, kind: input, shape index: {}]
  %s5 = inlined_call_operand.vmem [shape: f32[6,64], index: 5, kind: input, shape index: {}]
  %s6 = inlined_call_operand.hbm [shape: f32[16,32], index: 6, kind: output, shape index: {}]
  %s7 = sld [smem:[#allocation0]]
  $region34: #{tpu_custom_call.1} parent=0
    _
  %s9 = ssub.s32 1, %s7
  %s10 = scalar_select 0, %s9, %s7
  $region1: #{tpu_custom_call.1} parent=0
    #allocation2 [shape = 'u8[8192]{0}', space=vmem, size = 0x2000, scoped, tag = 'output window, operand 0, single buffered']
    #allocation3 [shape = 's32[1]{0}', space=sflag, size = 0x4, scoped, tag = 'scoped memory for tpu_custom_call.1']
    %11 = vsyncpa [#allocation3], 0
    // Predicated region
    $region2: #{tpu_custom_call.1} parent=1 // pred_check
      _
    $region3: #{tpu_custom_call.1} parent=1 // pred_check_branch
      %13 = sbr.rel (0) target = $region5
    $region4: #{tpu_custom_call.1} parent=1 // pred_region
      _
    $region5: #{tpu_custom_call.1} parent=1 // pred_fallthru
      _
    // Predicated region
    $region6: #{tpu_custom_call.1} parent=1 // pred_check
      _
    $region7: #{tpu_custom_call.1} parent=1 // pred_check_branch
      %15 = sbr.rel (0) target = $region9
    $region8: #{tpu_custom_call.1} parent=1 // pred_region
      _
    $region9: #{tpu_custom_call.1} parent=1 // pred_fallthru
      _
    // Predicated region
    $region10: #{tpu_custom_call.1} parent=1 // pred_check
      _
    $region11: #{tpu_custom_call.1} parent=1 // pred_check_branch
      %17 = sbr.rel (0) target = $region13
    $region12: #{tpu_custom_call.1} parent=1 // pred_region
      _
    $region13: #{tpu_custom_call.1} parent=1 // pred_fallthru
      _
    // Predicated region
    $region14: #{tpu_custom_call.1} parent=1 // pred_check
      _
    $region15: #{tpu_custom_call.1} parent=1 // pred_check_branch
      %19 = sbr.rel (0) target = $region17
    $region16: #{tpu_custom_call.1} parent=1 // pred_region
      _
    $region17: #{tpu_custom_call.1} parent=1 // pred_fallthru
      _
    // Predicated region
    $region18: #{tpu_custom_call.1} parent=1 // pred_check
      _
    $region19: #{tpu_custom_call.1} parent=1 // pred_check_branch
      %21 = sbr.rel (0) target = $region21
    $region20: #{tpu_custom_call.1} parent=1 // pred_region
      _
    $region21: #{tpu_custom_call.1} parent=1 // pred_fallthru
      _
    // Predicated region
    $region22: #{tpu_custom_call.1} parent=1 // pred_check
      _
    $region23: #{tpu_custom_call.1} parent=1 // pred_check_branch
      %23 = sbr.rel (0) target = $region25
    $region24: #{tpu_custom_call.1} parent=1 // pred_region
      _
    $region25: #{tpu_custom_call.1} parent=1 // pred_fallthru
      _
    %v25 = vld [vmem:[%s0] sm:$0xff]
    %v26 = vld [vmem:[%s0 + $0x8] sm:$0xff]
    %v27 = vpack.c.bf16 %v26, %v25
    %v28 = vld [vmem:[%s1] sm:$0xf]
    %v29 = vld [vmem:[%s1 + $0x4] sm:$0xf]
    %v30 = vld [vmem:[%s1 + $0x8] sm:$0xf]
    %v31 = vld [vmem:[%s1 + $0xc] sm:$0xf]
    %v32 = vld [vmem:[%s1 + $0x10] sm:$0xf]
    %v33 = vld [vmem:[%s1 + $0x14] sm:$0xf]
    %v34 = vld [vmem:[%s1 + $0x18] sm:$0xf]
    %v35 = vld [vmem:[%s1 + $0x1c] sm:$0xf]
    %v36 = vld [vmem:[%s1 + $0x20] sm:$0xf]
    %v37 = vld [vmem:[%s1 + $0x24] sm:$0xf]
    %v38 = vld [vmem:[%s1 + $0x28] sm:$0xf]
    %v39 = vld [vmem:[%s1 + $0x2c] sm:$0xf]
    %v40 = vld [vmem:[%s1 + $0x30] sm:$0xf]
    %v41 = vld [vmem:[%s1 + $0x34] sm:$0xf]
    %v42 = vld [vmem:[%s1 + $0x38] sm:$0xf]
    %v43 = vld [vmem:[%s1 + $0x3c] sm:$0xf]
    %v48 = vunpack.c.l.b16 %v28
    %v49 = vunpack.c.l.b16 %v29
    %v50 = vunpack.c.l.b16 %v30
    %v51 = vunpack.c.l.b16 %v31
    %v52 = vpack.c.b16 %v49, %v48
    %v53 = vpack.c.b16 %v51, %v50
    %vm56 = vcmask 261120
    %v58 = vsel %vm56, %v27, 0
    %60 = vmatprep.subr.bf16.mxu0 0
    %61 = vmatpush1.bf16.msra.mxu0 %v52
    %62 = vmatprep.subr.bf16.mxu0 0
    %63 = vmatpush1.bf16.msra.mxu0 %v53
    %64 = vmatprep.subr.bf16.mxu0 0
    %65 = vmatpush1.bf16.msra.mxu0 0
    %66 = vmatprep.subr.bf16.mxu0 0
    %67 = vmatpush1.bf16.msra.mxu0 0
    %68 = vmatprep.subr.bf16.mxu0 0
    %69 = vmatpush1.bf16.msra.mxu0 0
    %70 = vmatprep.subr.bf16.mxu0 0
    %71 = vmatpush1.bf16.msra.mxu0 0
    %72 = vmatprep.subr.bf16.mxu0 0
    %73 = vmatpush1.bf16.msra.mxu0 0
    %74 = vmatprep.subr.bf16.mxu0 0
    %75 = vmatpush1.bf16.msra.mxu0 0
    %76 = vmatprep.subr.bf16.mxu0 0
    %77 = vmatpush1.bf16.msra.mxu0 0
    %78 = vmatprep.subr.bf16.mxu0 0
    %79 = vmatpush1.bf16.msra.mxu0 0
    %80 = vmatprep.subr.bf16.mxu0 0
    %81 = vmatpush1.bf16.msra.mxu0 0
    %82 = vmatprep.subr.bf16.mxu0 0
    %83 = vmatpush1.bf16.msra.mxu0 0
    %84 = vmatprep.subr.bf16.mxu0 0
    %85 = vmatpush1.bf16.msra.mxu0 0
    %86 = vmatprep.subr.bf16.mxu0 0
    %87 = vmatpush1.bf16.msra.mxu0 0
    %88 = vmatprep.subr.bf16.mxu0 0
    %89 = vmatpush1.bf16.msra.mxu0 0
    %90 = vmatprep.subr.bf16.mxu0 0
    %91 = vmatpush1.bf16.msra.mxu0 0
    %92 = vmatprep.mubr.bf16.mxu0 0
    %93 = vmatmul.mubr.bf16.gmra.mrb[0].mxu0 %v58
    %v94 = vpop.f32.mrb[0].mxu0
    %v95 = vadd.f32 0.0, %v94
    %v96 = vpop.f32.mrb[0].mxu0
    %v97 = vpop.f32.mrb[0].mxu0
    %v98 = vadd.f32 0.0, %v97
    %v99 = vpop.f32.mrb[0].mxu0
    %100 = vdwg.mxu0
    %v105 = vunpack.c.l.b16 %v32
    %v106 = vunpack.c.l.b16 %v33
    %v107 = vunpack.c.l.b16 %v34
    %v108 = vunpack.c.l.b16 %v35
    %v109 = vpack.c.b16 %v106, %v105
    %v110 = vpack.c.b16 %v108, %v107
    %113 = vmatprep.subr.bf16.mxu0 0
    %114 = vmatpush1.bf16.msra.mxu0 %v109
    %115 = vmatprep.subr.bf16.mxu0 0
    %116 = vmatpush1.bf16.msra.mxu0 %v110
    %117 = vmatprep.subr.bf16.mxu0 0
    %118 = vmatpush1.bf16.msra.mxu0 0
    %119 = vmatprep.subr.bf16.mxu0 0
    %120 = vmatpush1.bf16.msra.mxu0 0
    %121 = vmatprep.subr.bf16.mxu0 0
    %122 = vmatpush1.bf16.msra.mxu0 0
    %123 = vmatprep.subr.bf16.mxu0 0
    %124 = vmatpush1.bf16.msra.mxu0 0
    %125 = vmatprep.subr.bf16.mxu0 0
    %126 = vmatpush1.bf16.msra.mxu0 0
    %127 = vmatprep.subr.bf16.mxu0 0
    %128 = vmatpush1.bf16.msra.mxu0 0
    %129 = vmatprep.subr.bf16.mxu0 0
    %130 = vmatpush1.bf16.msra.mxu0 0
    %131 = vmatprep.subr.bf16.mxu0 0
    %132 = vmatpush1.bf16.msra.mxu0 0
    %133 = vmatprep.subr.bf16.mxu0 0
    %134 = vmatpush1.bf16.msra.mxu0 0
    %135 = vmatprep.subr.bf16.mxu0 0
    %136 = vmatpush1.bf16.msra.mxu0 0
    %137 = vmatprep.subr.bf16.mxu0 0
    %138 = vmatpush1.bf16.msra.mxu0 0
    %139 = vmatprep.subr.bf16.mxu0 0
    %140 = vmatpush1.bf16.msra.mxu0 0
    %141 = vmatprep.subr.bf16.mxu0 0
    %142 = vmatpush1.bf16.msra.mxu0 0
    %143 = vmatprep.subr.bf16.mxu0 0
    %144 = vmatpush1.bf16.msra.mxu0 0
    %145 = vmatprep.mubr.bf16.mxu0 0
    %146 = vmatmul.mubr.bf16.gmra.mrb[0].mxu0 %v58
    %v147 = vpop.f32.mrb[0].mxu0
    %v148 = vadd.f32 0.0, %v147
    %v149 = vpop.f32.mrb[0].mxu0
    %v150 = vpop.f32.mrb[0].mxu0
    %v151 = vadd.f32 0.0, %v150
    %v152 = vpop.f32.mrb[0].mxu0
    %153 = vdwg.mxu0
    %v158 = vunpack.c.l.b16 %v36
    %v159 = vunpack.c.l.b16 %v37
    %v160 = vunpack.c.l.b16 %v38
    %v161 = vunpack.c.l.b16 %v39
    %v162 = vpack.c.b16 %v159, %v158
    %v163 = vpack.c.b16 %v161, %v160
    %166 = vmatprep.subr.bf16.mxu0 0
    %167 = vmatpush1.bf16.msra.mxu0 %v162
    %168 = vmatprep.subr.bf16.mxu0 0
    %169 = vmatpush1.bf16.msra.mxu0 %v163
    %170 = vmatprep.subr.bf16.mxu0 0
    %171 = vmatpush1.bf16.msra.mxu0 0
    %172 = vmatprep.subr.bf16.mxu0 0
    %173 = vmatpush1.bf16.msra.mxu0 0
    %174 = vmatprep.subr.bf16.mxu0 0
    %175 = vmatpush1.bf16.msra.mxu0 0
    %176 = vmatprep.subr.bf16.mxu0 0
    %177 = vmatpush1.bf16.msra.mxu0 0
    %178 = vmatprep.subr.bf16.mxu0 0
    %179 = vmatpush1.bf16.msra.mxu0 0
    %180 = vmatprep.subr.bf16.mxu0 0
    %181 = vmatpush1.bf16.msra.mxu0 0
    %182 = vmatprep.subr.bf16.mxu0 0
    %183 = vmatpush1.bf16.msra.mxu0 0
    %184 = vmatprep.subr.bf16.mxu0 0
    %185 = vmatpush1.bf16.msra.mxu0 0
    %186 = vmatprep.subr.bf16.mxu0 0
    %187 = vmatpush1.bf16.msra.mxu0 0
    %188 = vmatprep.subr.bf16.mxu0 0
    %189 = vmatpush1.bf16.msra.mxu0 0
    %190 = vmatprep.subr.bf16.mxu0 0
    %191 = vmatpush1.bf16.msra.mxu0 0
    %192 = vmatprep.subr.bf16.mxu0 0
    %193 = vmatpush1.bf16.msra.mxu0 0
    %194 = vmatprep.subr.bf16.mxu0 0
    %195 = vmatpush1.bf16.msra.mxu0 0
    %196 = vmatprep.subr.bf16.mxu0 0
    %197 = vmatpush1.bf16.msra.mxu0 0
    %198 = vmatprep.mubr.bf16.mxu0 0
    %199 = vmatmul.mubr.bf16.gmra.mrb[0].mxu0 %v58
    %v200 = vpop.f32.mrb[0].mxu0
    %v201 = vadd.f32 0.0, %v200
    %v202 = vpop.f32.mrb[0].mxu0
    %v203 = vpop.f32.mrb[0].mxu0
    %v204 = vadd.f32 0.0, %v203
    %v205 = vpop.f32.mrb[0].mxu0
    %206 = vdwg.mxu0
    %v211 = vunpack.c.l.b16 %v40
    %v212 = vunpack.c.l.b16 %v41
    %v213 = vunpack.c.l.b16 %v42
    %v214 = vunpack.c.l.b16 %v43
    %v215 = vpack.c.b16 %v212, %v211
    %v216 = vpack.c.b16 %v214, %v213
    %219 = vmatprep.subr.bf16.mxu0 0
    %220 = vmatpush1.bf16.msra.mxu0 %v215
    %221 = vmatprep.subr.bf16.mxu0 0
    %222 = vmatpush1.bf16.msra.mxu0 %v216
    %223 = vmatprep.subr.bf16.mxu0 0
    %224 = vmatpush1.bf16.msra.mxu0 0
    %225 = vmatprep.subr.bf16.mxu0 0
    %226 = vmatpush1.bf16.msra.mxu0 0
    %227 = vmatprep.subr.bf16.mxu0 0
    %228 = vmatpush1.bf16.msra.mxu0 0
    %229 = vmatprep.subr.bf16.mxu0 0
    %230 = vmatpush1.bf16.msra.mxu0 0
    %231 = vmatprep.subr.bf16.mxu0 0
    %232 = vmatpush1.bf16.msra.mxu0 0
    %233 = vmatprep.subr.bf16.mxu0 0
    %234 = vmatpush1.bf16.msra.mxu0 0
    %235 = vmatprep.subr.bf16.mxu0 0
    %236 = vmatpush1.bf16.msra.mxu0 0
    %237 = vmatprep.subr.bf16.mxu0 0
    %238 = vmatpush1.bf16.msra.mxu0 0
    %239 = vmatprep.subr.bf16.mxu0 0
    %240 = vmatpush1.bf16.msra.mxu0 0
    %241 = vmatprep.subr.bf16.mxu0 0
    %242 = vmatpush1.bf16.msra.mxu0 0
    %243 = vmatprep.subr.bf16.mxu0 0
    %244 = vmatpush1.bf16.msra.mxu0 0
    %245 = vmatprep.subr.bf16.mxu0 0
    %246 = vmatpush1.bf16.msra.mxu0 0
    %247 = vmatprep.subr.bf16.mxu0 0
    %248 = vmatpush1.bf16.msra.mxu0 0
    %249 = vmatprep.subr.bf16.mxu0 0
    %250 = vmatpush1.bf16.msra.mxu0 0
    %251 = vmatprep.mubr.bf16.mxu0 0
    %252 = vmatmul.mubr.bf16.gmra.mrb[0].mxu0 %v58
    %v253 = vpop.f32.mrb[0].mxu0
    %v254 = vadd.f32 0.0, %v253
    %v255 = vpop.f32.mrb[0].mxu0
    %v256 = vpop.f32.mrb[0].mxu0
    %v257 = vadd.f32 0.0, %v256
    %v258 = vpop.f32.mrb[0].mxu0
    %259 = vdwg.mxu0
    %v260 = vpack.c.bf16 %v98, %v95
    %v261 = vpack.c.bf16 %v151, %v148
    %v262 = vpack.c.bf16 %v204, %v201
    %v263 = vpack.c.bf16 %v257, %v254
    %265 = vrot.lane.b32.xlu0 %v260, 120
    %v266 = vpop.permute.xlu0 %265
    %vm267 = vcmask 64512
    %v269 = vsel %vm267, %v260, 0
    %v272 = vsel %vm267, %v266, 0
    %274 = vmatprep.subr.bf16.mxu0 0
    %275 = vmatpush1.bf16.xpose.msra.mxu0 %v272
    %276 = vmatprep.subr.bf16.mxu0 0
    %277 = vmatpush1.bf16.xpose.msra.mxu0 0
    %278 = vmatprep.subr.bf16.mxu0 0
    %279 = vmatpush1.bf16.xpose.msra.mxu0 0
    %280 = vmatprep.subr.bf16.mxu0 0
    %281 = vmatpush1.bf16.xpose.msra.mxu0 0
    %282 = vmatprep.subr.bf16.mxu0 0
    %283 = vmatpush1.bf16.xpose.msra.mxu0 0
    %284 = vmatprep.subr.bf16.mxu0 0
    %285 = vmatpush1.bf16.xpose.msra.mxu0 0
    %286 = vmatprep.subr.bf16.mxu0 0
    %287 = vmatpush1.bf16.xpose.msra.mxu0 0
    %288 = vmatprep.subr.bf16.mxu0 0
    %289 = vmatpush1.bf16.xpose.msra.mxu0 0
    %290 = vmatprep.subr.bf16.mxu0 0
    %291 = vmatpush1.bf16.xpose.msra.mxu0 0
    %292 = vmatprep.subr.bf16.mxu0 0
    %293 = vmatpush1.bf16.xpose.msra.mxu0 0
    %294 = vmatprep.subr.bf16.mxu0 0
    %295 = vmatpush1.bf16.xpose.msra.mxu0 0
    %296 = vmatprep.subr.bf16.mxu0 0
    %297 = vmatpush1.bf16.xpose.msra.mxu0 0
    %298 = vmatprep.subr.bf16.mxu0 0
    %299 = vmatpush1.bf16.xpose.msra.mxu0 0
    %300 = vmatprep.subr.bf16.mxu0 0
    %301 = vmatpush1.bf16.xpose.msra.mxu0 0
    %302 = vmatprep.subr.bf16.mxu0 0
    %303 = vmatpush1.bf16.xpose.msra.mxu0 0
    %304 = vmatprep.subr.bf16.mxu0 0
    %305 = vmatpush1.bf16.xpose.msra.mxu0 0
    %306 = vmatprep.mubr.bf16.mxu0 0
    %307 = vmatmul.mubr.bf16.gmra.mrb[0].mxu0 %v269
    %v308 = vpop.f32.mrb[0].mxu0
    %v309 = vadd.f32 0.0, %v308
    %v310 = vpop.f32.mrb[0].mxu0
    %v311 = vpop.f32.mrb[0].mxu0
    %v312 = vadd.f32 0.0, %v311
    %v313 = vpop.f32.mrb[0].mxu0
    %314 = vdwg.mxu0
    %316 = vrot.lane.b32.xlu0 %v261, 120
    %v317 = vpop.permute.xlu0 %316
    %v319 = vsel %vm267, %v261, 0
    %v322 = vsel %vm267, %v317, 0
    %324 = vmatprep.subr.bf16.mxu0 0
    %325 = vmatpush1.bf16.xpose.msra.mxu0 %v322
    %326 = vmatprep.subr.bf16.mxu0 0
    %327 = vmatpush1.bf16.xpose.msra.mxu0 0
    %328 = vmatprep.subr.bf16.mxu0 0
    %329 = vmatpush1.bf16.xpose.msra.mxu0 0
    %330 = vmatprep.subr.bf16.mxu0 0
    %331 = vmatpush1.bf16.xpose.msra.mxu0 0
    %332 = vmatprep.subr.bf16.mxu0 0
    %333 = vmatpush1.bf16.xpose.msra.mxu0 0
    %334 = vmatprep.subr.bf16.mxu0 0
    %335 = vmatpush1.bf16.xpose.msra.mxu0 0
    %336 = vmatprep.subr.bf16.mxu0 0
    %337 = vmatpush1.bf16.xpose.msra.mxu0 0
    %338 = vmatprep.subr.bf16.mxu0 0
    %339 = vmatpush1.bf16.xpose.msra.mxu0 0
    %340 = vmatprep.subr.bf16.mxu0 0
    %341 = vmatpush1.bf16.xpose.msra.mxu0 0
    %342 = vmatprep.subr.bf16.mxu0 0
    %343 = vmatpush1.bf16.xpose.msra.mxu0 0
    %344 = vmatprep.subr.bf16.mxu0 0
    %345 = vmatpush1.bf16.xpose.msra.mxu0 0
    %346 = vmatprep.subr.bf16.mxu0 0
    %347 = vmatpush1.bf16.xpose.msra.mxu0 0
    %348 = vmatprep.subr.bf16.mxu0 0
    %349 = vmatpush1.bf16.xpose.msra.mxu0 0
    %350 = vmatprep.subr.bf16.mxu0 0
    %351 = vmatpush1.bf16.xpose.msra.mxu0 0
    %352 = vmatprep.subr.bf16.mxu0 0
    %353 = vmatpush1.bf16.xpose.msra.mxu0 0
    %354 = vmatprep.subr.bf16.mxu0 0
    %355 = vmatpush1.bf16.xpose.msra.mxu0 0
    %356 = vmatprep.mubr.bf16.mxu0 0
    %357 = vmatmul.mubr.bf16.gmra.mrb[0].mxu0 %v319
    %v358 = vpop.f32.mrb[0].mxu0
    %v359 = vadd.f32 0.0, %v358
    %v360 = vpop.f32.mrb[0].mxu0
    %v361 = vpop.f32.mrb[0].mxu0
    %v362 = vadd.f32 0.0, %v361
    %v363 = vpop.f32.mrb[0].mxu0
    %364 = vdwg.mxu0
    %366 = vrot.lane.b32.xlu0 %v262, 120
    %v367 = vpop.permute.xlu0 %366
    %v369 = vsel %vm267, %v262, 0
    %v372 = vsel %vm267, %v367, 0
    %374 = vmatprep.subr.bf16.mxu0 0
    %375 = vmatpush1.bf16.xpose.msra.mxu0 %v372
    %376 = vmatprep.subr.bf16.mxu0 0
    %377 = vmatpush1.bf16.xpose.msra.mxu0 0
    %378 = vmatprep.subr.bf16.mxu0 0
    %379 = vmatpush1.bf16.xpose.msra.mxu0 0
    %380 = vmatprep.subr.bf16.mxu0 0
    %381 = vmatpush1.bf16.xpose.msra.mxu0 0
    %382 = vmatprep.subr.bf16.mxu0 0
    %383 = vmatpush1.bf16.xpose.msra.mxu0 0
    %384 = vmatprep.subr.bf16.mxu0 0
    %385 = vmatpush1.bf16.xpose.msra.mxu0 0
    %386 = vmatprep.subr.bf16.mxu0 0
    %387 = vmatpush1.bf16.xpose.msra.mxu0 0
    %388 = vmatprep.subr.bf16.mxu0 0
    %389 = vmatpush1.bf16.xpose.msra.mxu0 0
    %390 = vmatprep.subr.bf16.mxu0 0
    %391 = vmatpush1.bf16.xpose.msra.mxu0 0
    %392 = vmatprep.subr.bf16.mxu0 0
    %393 = vmatpush1.bf16.xpose.msra.mxu0 0
    %394 = vmatprep.subr.bf16.mxu0 0
    %395 = vmatpush1.bf16.xpose.msra.mxu0 0
    %396 = vmatprep.subr.bf16.mxu0 0
    %397 = vmatpush1.bf16.xpose.msra.mxu0 0
    %398 = vmatprep.subr.bf16.mxu0 0
    %399 = vmatpush1.bf16.xpose.msra.mxu0 0
    %400 = vmatprep.subr.bf16.mxu0 0
    %401 = vmatpush1.bf16.xpose.msra.mxu0 0
    %402 = vmatprep.subr.bf16.mxu0 0
    %403 = vmatpush1.bf16.xpose.msra.mxu0 0
    %404 = vmatprep.subr.bf16.mxu0 0
    %405 = vmatpush1.bf16.xpose.msra.mxu0 0
    %406 = vmatprep.mubr.bf16.mxu0 0
    %407 = vmatmul.mubr.bf16.gmra.mrb[0].mxu0 %v369
    %v408 = vpop.f32.mrb[0].mxu0
    %v409 = vadd.f32 0.0, %v408
    %v410 = vpop.f32.mrb[0].mxu0
    %v411 = vpop.f32.mrb[0].mxu0
    %v412 = vadd.f32 0.0, %v411
    %v413 = vpop.f32.mrb[0].mxu0
    %414 = vdwg.mxu0
    %416 = vrot.lane.b32.xlu0 %v263, 120
    %v417 = vpop.permute.xlu0 %416
    %v419 = vsel %vm267, %v263, 0
    %v422 = vsel %vm267, %v417, 0
    %424 = vmatprep.subr.bf16.mxu0 0
    %425 = vmatpush1.bf16.xpose.msra.mxu0 %v422
    %426 = vmatprep.subr.bf16.mxu0 0
    %427 = vmatpush1.bf16.xpose.msra.mxu0 0
    %428 = vmatprep.subr.bf16.mxu0 0
    %429 = vmatpush1.bf16.xpose.msra.mxu0 0
    %430 = vmatprep.subr.bf16.mxu0 0
    %431 = vmatpush1.bf16.xpose.msra.mxu0 0
    %432 = vmatprep.subr.bf16.mxu0 0
    %433 = vmatpush1.bf16.xpose.msra.mxu0 0
    %434 = vmatprep.subr.bf16.mxu0 0
    %435 = vmatpush1.bf16.xpose.msra.mxu0 0
    %436 = vmatprep.subr.bf16.mxu0 0
    %437 = vmatpush1.bf16.xpose.msra.mxu0 0
    %438 = vmatprep.subr.bf16.mxu0 0
    %439 = vmatpush1.bf16.xpose.msra.mxu0 0
    %440 = vmatprep.subr.bf16.mxu0 0
    %441 = vmatpush1.bf16.xpose.msra.mxu0 0
    %442 = vmatprep.subr.bf16.mxu0 0
    %443 = vmatpush1.bf16.xpose.msra.mxu0 0
    %444 = vmatprep.subr.bf16.mxu0 0
    %445 = vmatpush1.bf16.xpose.msra.mxu0 0
    %446 = vmatprep.subr.bf16.mxu0 0
    %447 = vmatpush1.bf16.xpose.msra.mxu0 0
    %448 = vmatprep.subr.bf16.mxu0 0
    %449 = vmatpush1.bf16.xpose.msra.mxu0 0
    %450 = vmatprep.subr.bf16.mxu0 0
    %451 = vmatpush1.bf16.xpose.msra.mxu0 0
    %452 = vmatprep.subr.bf16.mxu0 0
    %453 = vmatpush1.bf16.xpose.msra.mxu0 0
    %454 = vmatprep.subr.bf16.mxu0 0
    %455 = vmatpush1.bf16.xpose.msra.mxu0 0
    %456 = vmatprep.mubr.bf16.mxu0 0
    %457 = vmatmul.mubr.bf16.gmra.mrb[0].mxu0 %v419
    %v458 = vpop.f32.mrb[0].mxu0
    %v459 = vadd.f32 0.0, %v458
    %v460 = vpop.f32.mrb[0].mxu0
    %v461 = vpop.f32.mrb[0].mxu0
    %v462 = vadd.f32 0.0, %v461
    %v463 = vpop.f32.mrb[0].mxu0
    %464 = vdwg.mxu0
    %v465 = vlaneseq
    %v466 = vshrl.u32 %v465, 7
    %v467 = vadd.s32 %v466, 8
    %v468 = vlaneseq
    %v469 = vand.u32 %v468, 127
    %v470 = vshrl.u32 %v466, 3
    %v471 = vshrl.u32 %v467, 3
    %v472 = vshrl.u32 %v469, 3
    %vm473 = vcmp.eq.s32.totalorder %v470, %v472
    %vm474 = vcmp.eq.s32.totalorder %v471, %v472
    %v475 = vsel %vm473, 1, 0
    %v476 = vsel %vm474, 1, 0
    %vm477 = vcmp.eq.s32.totalorder %v475, 1
    %vm478 = vcmp.eq.s32.totalorder %v476, 1
    %v479 = vsel %vm477, %v309, -1e+30
    %v480 = vsel %vm478, %v312, -1e+30
    %v481 = vsel %vm477, %v359, -1e+30
    %v482 = vsel %vm478, %v362, -1e+30
    %v483 = vsel %vm477, %v409, -1e+30
    %v484 = vsel %vm478, %v412, -1e+30
    %v485 = vsel %vm477, %v459, -1e+30
    %v486 = vsel %vm478, %v462, -1e+30
    %vm487 = vcmask 130048
    %v488 = vsel %vm487, %v479, -inf
    %489 = vmax.xlane.f32.xlu0 %v488
    %v490 = vpop.xlane.xlu0 %489
    %v491 = vsel %vm487, %v480, -inf
    %492 = vmax.xlane.f32.xlu0 %v491
    %v493 = vpop.xlane.xlu0 %492
    %v494 = vsel %vm487, %v481, -inf
    %495 = vmax.xlane.f32.xlu0 %v494
    %v496 = vpop.xlane.xlu0 %495
    %v497 = vsel %vm487, %v482, -inf
    %498 = vmax.xlane.f32.xlu0 %v497
    %v499 = vpop.xlane.xlu0 %498
    %v500 = vsel %vm487, %v483, -inf
    %501 = vmax.xlane.f32.xlu0 %v500
    %v502 = vpop.xlane.xlu0 %501
    %v503 = vsel %vm487, %v484, -inf
    %504 = vmax.xlane.f32.xlu0 %v503
    %v505 = vpop.xlane.xlu0 %504
    %v506 = vsel %vm487, %v485, -inf
    %507 = vmax.xlane.f32.xlu0 %v506
    %v508 = vpop.xlane.xlu0 %507
    %v509 = vsel %vm487, %v486, -inf
    %510 = vmax.xlane.f32.xlu0 %v509
    %v511 = vpop.xlane.xlu0 %510
    %v512 = vsub.f32 %v479, %v490
    %v513 = vsub.f32 %v480, %v493
    %v514 = vsub.f32 %v481, %v496
    %v515 = vsub.f32 %v482, %v499
    %v516 = vsub.f32 %v483, %v502
    %v517 = vsub.f32 %v484, %v505
    %v518 = vsub.f32 %v485, %v508
    %v519 = vsub.f32 %v486, %v511
    %v520 = vmul.f32 %v512, 1.442695
    %v521 = vpow.pop %v520
    %v522 = vmul.f32 %v513, 1.442695
    %v523 = vpow.pop %v522
    %v524 = vmul.f32 %v514, 1.442695
    %v525 = vpow.pop %v524
    %v526 = vmul.f32 %v515, 1.442695
    %v527 = vpow.pop %v526
    %v528 = vmul.f32 %v516, 1.442695
    %v529 = vpow.pop %v528
    %v530 = vmul.f32 %v517, 1.442695
    %v531 = vpow.pop %v530
    %v532 = vmul.f32 %v518, 1.442695
    %v533 = vpow.pop %v532
    %v534 = vmul.f32 %v519, 1.442695
    %v535 = vpow.pop %v534
    %v536 = vsel %vm487, %v521, 0.0
    %537 = vadd.xlane.f32.xlu0 %v536
    %v538 = vpop.xlane.xlu0 %537
    %v539 = vsel %vm487, %v523, 0.0
    %540 = vadd.xlane.f32.xlu0 %v539
    %v541 = vpop.xlane.xlu0 %540
    %v542 = vsel %vm487, %v525, 0.0
    %543 = vadd.xlane.f32.xlu0 %v542
    %v544 = vpop.xlane.xlu0 %543
    %v545 = vsel %vm487, %v527, 0.0
    %546 = vadd.xlane.f32.xlu0 %v545
    %v547 = vpop.xlane.xlu0 %546
    %v548 = vsel %vm487, %v529, 0.0
    %549 = vadd.xlane.f32.xlu0 %v548
    %v550 = vpop.xlane.xlu0 %549
    %v551 = vsel %vm487, %v531, 0.0
    %552 = vadd.xlane.f32.xlu0 %v551
    %v553 = vpop.xlane.xlu0 %552
    %v554 = vsel %vm487, %v533, 0.0
    %555 = vadd.xlane.f32.xlu0 %v554
    %v556 = vpop.xlane.xlu0 %555
    %v557 = vsel %vm487, %v535, 0.0
    %558 = vadd.xlane.f32.xlu0 %v557
    %v559 = vpop.xlane.xlu0 %558
    %v560 = vrcp.pop %v538
    %v561 = vmul.f32 %v521, %v560
    %v562 = vrcp.pop %v541
    %v563 = vmul.f32 %v523, %v562
    %v564 = vrcp.pop %v544
    %v565 = vmul.f32 %v525, %v564
    %v566 = vrcp.pop %v547
    %v567 = vmul.f32 %v527, %v566
    %v568 = vrcp.pop %v550
    %v569 = vmul.f32 %v529, %v568
    %v570 = vrcp.pop %v553
    %v571 = vmul.f32 %v531, %v570
    %v572 = vrcp.pop %v556
    %v573 = vmul.f32 %v533, %v572
    %v574 = vrcp.pop %v559
    %v575 = vmul.f32 %v535, %v574
    %v576 = vpack.c.bf16 %v563, %v561
    %v577 = vpack.c.bf16 %v567, %v565
    %v578 = vpack.c.bf16 %v571, %v569
    %v579 = vpack.c.bf16 %v575, %v573
    %580 = vrot.lane.b32.xlu0 %v260, 112
    %v581 = vpop.permute.xlu0 %580
    %v584 = vsel %vm487, %v576, 0
    %586 = vmatprep.subr.bf16.mxu0 0
    %587 = vmatpush1.bf16.msra.mxu0 %v581
    %588 = vmatprep.subr.bf16.mxu0 0
    %589 = vmatpush1.bf16.msra.mxu0 0
    %590 = vmatprep.subr.bf16.mxu0 0
    %591 = vmatpush1.bf16.msra.mxu0 0
    %592 = vmatprep.subr.bf16.mxu0 0
    %593 = vmatpush1.bf16.msra.mxu0 0
    %594 = vmatprep.subr.bf16.mxu0 0
    %595 = vmatpush1.bf16.msra.mxu0 0
    %596 = vmatprep.subr.bf16.mxu0 0
    %597 = vmatpush1.bf16.msra.mxu0 0
    %598 = vmatprep.subr.bf16.mxu0 0
    %599 = vmatpush1.bf16.msra.mxu0 0
    %600 = vmatprep.subr.bf16.mxu0 0
    %601 = vmatpush1.bf16.msra.mxu0 0
    %602 = vmatprep.subr.bf16.mxu0 0
    %603 = vmatpush1.bf16.msra.mxu0 0
    %604 = vmatprep.subr.bf16.mxu0 0
    %605 = vmatpush1.bf16.msra.mxu0 0
    %606 = vmatprep.subr.bf16.mxu0 0
    %607 = vmatpush1.bf16.msra.mxu0 0
    %608 = vmatprep.subr.bf16.mxu0 0
    %609 = vmatpush1.bf16.msra.mxu0 0
    %610 = vmatprep.subr.bf16.mxu0 0
    %611 = vmatpush1.bf16.msra.mxu0 0
    %612 = vmatprep.subr.bf16.mxu0 0
    %613 = vmatpush1.bf16.msra.mxu0 0
    %614 = vmatprep.subr.bf16.mxu0 0
    %615 = vmatpush1.bf16.msra.mxu0 0
    %616 = vmatprep.subr.bf16.mxu0 0
    %617 = vmatpush1.bf16.msra.mxu0 0
    %618 = vmatprep.mubr.bf16.mxu0 0
    %619 = vmatmul.mubr.bf16.gmra.mrb[0].mxu0 %v584
    %v620 = vpop.f32.mrb[0].mxu0
    %v621 = vadd.f32 0.0, %v620
    %v622 = vpop.f32.mrb[0].mxu0
    %v623 = vpop.f32.mrb[0].mxu0
    %v624 = vadd.f32 0.0, %v623
    %v625 = vpop.f32.mrb[0].mxu0
    %626 = vdwg.mxu0
    %627 = vrot.lane.b32.xlu0 %v261, 112
    %v628 = vpop.permute.xlu0 %627
    %v631 = vsel %vm487, %v577, 0
    %633 = vmatprep.subr.bf16.mxu0 0
    %634 = vmatpush1.bf16.msra.mxu0 %v628
    %635 = vmatprep.subr.bf16.mxu0 0
    %636 = vmatpush1.bf16.msra.mxu0 0
    %637 = vmatprep.subr.bf16.mxu0 0
    %638 = vmatpush1.bf16.msra.mxu0 0
    %639 = vmatprep.subr.bf16.mxu0 0
    %640 = vmatpush1.bf16.msra.mxu0 0
    %641 = vmatprep.subr.bf16.mxu0 0
    %642 = vmatpush1.bf16.msra.mxu0 0
    %643 = vmatprep.subr.bf16.mxu0 0
    %644 = vmatpush1.bf16.msra.mxu0 0
    %645 = vmatprep.subr.bf16.mxu0 0
    %646 = vmatpush1.bf16.msra.mxu0 0
    %647 = vmatprep.subr.bf16.mxu0 0
    %648 = vmatpush1.bf16.msra.mxu0 0
    %649 = vmatprep.subr.bf16.mxu0 0
    %650 = vmatpush1.bf16.msra.mxu0 0
    %651 = vmatprep.subr.bf16.mxu0 0
    %652 = vmatpush1.bf16.msra.mxu0 0
    %653 = vmatprep.subr.bf16.mxu0 0
    %654 = vmatpush1.bf16.msra.mxu0 0
    %655 = vmatprep.subr.bf16.mxu0 0
    %656 = vmatpush1.bf16.msra.mxu0 0
    %657 = vmatprep.subr.bf16.mxu0 0
    %658 = vmatpush1.bf16.msra.mxu0 0
    %659 = vmatprep.subr.bf16.mxu0 0
    %660 = vmatpush1.bf16.msra.mxu0 0
    %661 = vmatprep.subr.bf16.mxu0 0
    %662 = vmatpush1.bf16.msra.mxu0 0
    %663 = vmatprep.subr.bf16.mxu0 0
    %664 = vmatpush1.bf16.msra.mxu0 0
    %665 = vmatprep.mubr.bf16.mxu0 0
    %666 = vmatmul.mubr.bf16.gmra.mrb[0].mxu0 %v631
    %v667 = vpop.f32.mrb[0].mxu0
    %v668 = vadd.f32 0.0, %v667
    %v669 = vpop.f32.mrb[0].mxu0
    %v670 = vpop.f32.mrb[0].mxu0
    %v671 = vadd.f32 0.0, %v670
    %v672 = vpop.f32.mrb[0].mxu0
    %673 = vdwg.mxu0
    %674 = vrot.lane.b32.xlu0 %v262, 112
    %v675 = vpop.permute.xlu0 %674
    %v678 = vsel %vm487, %v578, 0
    %680 = vmatprep.subr.bf16.mxu0 0
    %681 = vmatpush1.bf16.msra.mxu0 %v675
    %682 = vmatprep.subr.bf16.mxu0 0
    %683 = vmatpush1.bf16.msra.mxu0 0
    %684 = vmatprep.subr.bf16.mxu0 0
    %685 = vmatpush1.bf16.msra.mxu0 0
    %686 = vmatprep.subr.bf16.mxu0 0
    %687 = vmatpush1.bf16.msra.mxu0 0
    %688 = vmatprep.subr.bf16.mxu0 0
    %689 = vmatpush1.bf16.msra.mxu0 0
    %690 = vmatprep.subr.bf16.mxu0 0
    %691 = vmatpush1.bf16.msra.mxu0 0
    %692 = vmatprep.subr.bf16.mxu0 0
    %693 = vmatpush1.bf16.msra.mxu0 0
    %694 = vmatprep.subr.bf16.mxu0 0
    %695 = vmatpush1.bf16.msra.mxu0 0
    %696 = vmatprep.subr.bf16.mxu0 0
    %697 = vmatpush1.bf16.msra.mxu0 0
    %698 = vmatprep.subr.bf16.mxu0 0
    %699 = vmatpush1.bf16.msra.mxu0 0
    %700 = vmatprep.subr.bf16.mxu0 0
    %701 = vmatpush1.bf16.msra.mxu0 0
    %702 = vmatprep.subr.bf16.mxu0 0
    %703 = vmatpush1.bf16.msra.mxu0 0
    %704 = vmatprep.subr.bf16.mxu0 0
    %705 = vmatpush1.bf16.msra.mxu0 0
    %706 = vmatprep.subr.bf16.mxu0 0
    %707 = vmatpush1.bf16.msra.mxu0 0
    %708 = vmatprep.subr.bf16.mxu0 0
    %709 = vmatpush1.bf16.msra.mxu0 0
    %710 = vmatprep.subr.bf16.mxu0 0
    %711 = vmatpush1.bf16.msra.mxu0 0
    %712 = vmatprep.mubr.bf16.mxu0 0
    %713 = vmatmul.mubr.bf16.gmra.mrb[0].mxu0 %v678
    %v714 = vpop.f32.mrb[0].mxu0
    %v715 = vadd.f32 0.0, %v714
    %v716 = vpop.f32.mrb[0].mxu0
    %v717 = vpop.f32.mrb[0].mxu0
    %v718 = vadd.f32 0.0, %v717
    %v719 = vpop.f32.mrb[0].mxu0
    %720 = vdwg.mxu0
    %721 = vrot.lane.b32.xlu0 %v263, 112
    %v722 = vpop.permute.xlu0 %721
    %v725 = vsel %vm487, %v579, 0
    %727 = vmatprep.subr.bf16.mxu0 0
    %728 = vmatpush1.bf16.msra.mxu0 %v722
    %729 = vmatprep.subr.bf16.mxu0 0
    %730 = vmatpush1.bf16.msra.mxu0 0
    %731 = vmatprep.subr.bf16.mxu0 0
    %732 = vmatpush1.bf16.msra.mxu0 0
    %733 = vmatprep.subr.bf16.mxu0 0
    %734 = vmatpush1.bf16.msra.mxu0 0
    %735 = vmatprep.subr.bf16.mxu0 0
    %736 = vmatpush1.bf16.msra.mxu0 0
    %737 = vmatprep.subr.bf16.mxu0 0
    %738 = vmatpush1.bf16.msra.mxu0 0
    %739 = vmatprep.subr.bf16.mxu0 0
    %740 = vmatpush1.bf16.msra.mxu0 0
    %741 = vmatprep.subr.bf16.mxu0 0
    %742 = vmatpush1.bf16.msra.mxu0 0
    %743 = vmatprep.subr.bf16.mxu0 0
    %744 = vmatpush1.bf16.msra.mxu0 0
    %745 = vmatprep.subr.bf16.mxu0 0
    %746 = vmatpush1.bf16.msra.mxu0 0
    %747 = vmatprep.subr.bf16.mxu0 0
    %748 = vmatpush1.bf16.msra.mxu0 0
    %749 = vmatprep.subr.bf16.mxu0 0
    %750 = vmatpush1.bf16.msra.mxu0 0
    %751 = vmatprep.subr.bf16.mxu0 0
    %752 = vmatpush1.bf16.msra.mxu0 0
    %753 = vmatprep.subr.bf16.mxu0 0
    %754 = vmatpush1.bf16.msra.mxu0 0
    %755 = vmatprep.subr.bf16.mxu0 0
    %756 = vmatpush1.bf16.msra.mxu0 0
    %757 = vmatprep.subr.bf16.mxu0 0
    %758 = vmatpush1.bf16.msra.mxu0 0
    %759 = vmatprep.mubr.bf16.mxu0 0
    %760 = vmatmul.mubr.bf16.gmra.mrb[0].mxu0 %v725
    %v761 = vpop.f32.mrb[0].mxu0
    %v762 = vadd.f32 0.0, %v761
    %v763 = vpop.f32.mrb[0].mxu0
    %v764 = vpop.f32.mrb[0].mxu0
    %v765 = vadd.f32 0.0, %v764
    %v766 = vpop.f32.mrb[0].mxu0
    %767 = vdwg.mxu0
    %v768 = vpack.c.bf16 %v624, %v621
    %v769 = vpack.c.bf16 %v671, %v668
    %v770 = vpack.c.bf16 %v718, %v715
    %v771 = vpack.c.bf16 %v765, %v762
    %v772 = vld [vmem:[%s2] sm:$0xf]
    %v773 = vld [vmem:[%s2 + $0x4] sm:$0xf]
    %v774 = vld [vmem:[%s2 + $0x8] sm:$0xf]
    %v775 = vld [vmem:[%s2 + $0xc] sm:$0xf]
    %v777 = vsel %vm267, %v768, 0
    %vm779 = vcmask 1043456
    %v781 = vsel %vm779, %v772, 0
    %783 = vmatprep.subr.bf16.mxu0 0
    %784 = vmatpush1.bf16.msra.mxu0 %v781
    %785 = vmatprep.subr.bf16.mxu0 0
    %786 = vmatpush1.bf16.msra.mxu0 0
    %787 = vmatprep.subr.bf16.mxu0 0
    %788 = vmatpush1.bf16.msra.mxu0 0
    %789 = vmatprep.subr.bf16.mxu0 0
    %790 = vmatpush1.bf16.msra.mxu0 0
    %791 = vmatprep.subr.bf16.mxu0 0
    %792 = vmatpush1.bf16.msra.mxu0 0
    %793 = vmatprep.subr.bf16.mxu0 0
    %794 = vmatpush1.bf16.msra.mxu0 0
    %795 = vmatprep.subr.bf16.mxu0 0
    %796 = vmatpush1.bf16.msra.mxu0 0
    %797 = vmatprep.subr.bf16.mxu0 0
    %798 = vmatpush1.bf16.msra.mxu0 0
    %799 = vmatprep.subr.bf16.mxu0 0
    %800 = vmatpush1.bf16.msra.mxu0 0
    %801 = vmatprep.subr.bf16.mxu0 0
    %802 = vmatpush1.bf16.msra.mxu0 0
    %803 = vmatprep.subr.bf16.mxu0 0
    %804 = vmatpush1.bf16.msra.mxu0 0
    %805 = vmatprep.subr.bf16.mxu0 0
    %806 = vmatpush1.bf16.msra.mxu0 0
    %807 = vmatprep.subr.bf16.mxu0 0
    %808 = vmatpush1.bf16.msra.mxu0 0
    %809 = vmatprep.subr.bf16.mxu0 0
    %810 = vmatpush1.bf16.msra.mxu0 0
    %811 = vmatprep.subr.bf16.mxu0 0
    %812 = vmatpush1.bf16.msra.mxu0 0
    %813 = vmatprep.subr.bf16.mxu0 0
    %814 = vmatpush1.bf16.msra.mxu0 0
    %815 = vmatprep.mubr.bf16.mxu0 0
    %816 = vmatmul.mubr.bf16.gmra.mrb[0].mxu0 %v777
    %v817 = vpop.f32.mrb[0].mxu0
    %v818 = vadd.f32 0.0, %v817
    %v819 = vpop.f32.mrb[0].mxu0
    %v820 = vpop.f32.mrb[0].mxu0
    %v821 = vadd.f32 0.0, %v820
    %v822 = vpop.f32.mrb[0].mxu0
    %823 = vdwg.mxu0
    %v825 = vsel %vm267, %v769, 0
    %v828 = vsel %vm779, %v773, 0
    %830 = vmatprep.subr.bf16.mxu0 0
    %831 = vmatpush1.bf16.msra.mxu0 %v828
    %832 = vmatprep.subr.bf16.mxu0 0
    %833 = vmatpush1.bf16.msra.mxu0 0
    %834 = vmatprep.subr.bf16.mxu0 0
    %835 = vmatpush1.bf16.msra.mxu0 0
    %836 = vmatprep.subr.bf16.mxu0 0
    %837 = vmatpush1.bf16.msra.mxu0 0
    %838 = vmatprep.subr.bf16.mxu0 0
    %839 = vmatpush1.bf16.msra.mxu0 0
    %840 = vmatprep.subr.bf16.mxu0 0
    %841 = vmatpush1.bf16.msra.mxu0 0
    %842 = vmatprep.subr.bf16.mxu0 0
    %843 = vmatpush1.bf16.msra.mxu0 0
    %844 = vmatprep.subr.bf16.mxu0 0
    %845 = vmatpush1.bf16.msra.mxu0 0
    %846 = vmatprep.subr.bf16.mxu0 0
    %847 = vmatpush1.bf16.msra.mxu0 0
    %848 = vmatprep.subr.bf16.mxu0 0
    %849 = vmatpush1.bf16.msra.mxu0 0
    %850 = vmatprep.subr.bf16.mxu0 0
    %851 = vmatpush1.bf16.msra.mxu0 0
    %852 = vmatprep.subr.bf16.mxu0 0
    %853 = vmatpush1.bf16.msra.mxu0 0
    %854 = vmatprep.subr.bf16.mxu0 0
    %855 = vmatpush1.bf16.msra.mxu0 0
    %856 = vmatprep.subr.bf16.mxu0 0
    %857 = vmatpush1.bf16.msra.mxu0 0
    %858 = vmatprep.subr.bf16.mxu0 0
    %859 = vmatpush1.bf16.msra.mxu0 0
    %860 = vmatprep.subr.bf16.mxu0 0
    %861 = vmatpush1.bf16.msra.mxu0 0
    %862 = vmatprep.mubr.bf16.mxu0 0
    %863 = vmatmul.mubr.bf16.gmra.mrb[0].mxu0 %v825
    %v864 = vpop.f32.mrb[0].mxu0
    %v865 = vadd.f32 0.0, %v864
    %v866 = vpop.f32.mrb[0].mxu0
    %v867 = vpop.f32.mrb[0].mxu0
    %v868 = vadd.f32 0.0, %v867
    %v869 = vpop.f32.mrb[0].mxu0
    %870 = vdwg.mxu0
    %v872 = vsel %vm267, %v770, 0
    %v875 = vsel %vm779, %v774, 0
    %877 = vmatprep.subr.bf16.mxu0 0
    %878 = vmatpush1.bf16.msra.mxu0 %v875
    %879 = vmatprep.subr.bf16.mxu0 0
    %880 = vmatpush1.bf16.msra.mxu0 0
    %881 = vmatprep.subr.bf16.mxu0 0
    %882 = vmatpush1.bf16.msra.mxu0 0
    %883 = vmatprep.subr.bf16.mxu0 0
    %884 = vmatpush1.bf16.msra.mxu0 0
    %885 = vmatprep.subr.bf16.mxu0 0
    %886 = vmatpush1.bf16.msra.mxu0 0
    %887 = vmatprep.subr.bf16.mxu0 0
    %888 = vmatpush1.bf16.msra.mxu0 0
    %889 = vmatprep.subr.bf16.mxu0 0
    %890 = vmatpush1.bf16.msra.mxu0 0
    %891 = vmatprep.subr.bf16.mxu0 0
    %892 = vmatpush1.bf16.msra.mxu0 0
    %893 = vmatprep.subr.bf16.mxu0 0
    %894 = vmatpush1.bf16.msra.mxu0 0
    %895 = vmatprep.subr.bf16.mxu0 0
    %896 = vmatpush1.bf16.msra.mxu0 0
    %897 = vmatprep.subr.bf16.mxu0 0
    %898 = vmatpush1.bf16.msra.mxu0 0
    %899 = vmatprep.subr.bf16.mxu0 0
    %900 = vmatpush1.bf16.msra.mxu0 0
    %901 = vmatprep.subr.bf16.mxu0 0
    %902 = vmatpush1.bf16.msra.mxu0 0
    %903 = vmatprep.subr.bf16.mxu0 0
    %904 = vmatpush1.bf16.msra.mxu0 0
    %905 = vmatprep.subr.bf16.mxu0 0
    %906 = vmatpush1.bf16.msra.mxu0 0
    %907 = vmatprep.subr.bf16.mxu0 0
    %908 = vmatpush1.bf16.msra.mxu0 0
    %909 = vmatprep.mubr.bf16.mxu0 0
    %910 = vmatmul.mubr.bf16.gmra.mrb[0].mxu0 %v872
    %v911 = vpop.f32.mrb[0].mxu0
    %v912 = vadd.f32 0.0, %v911
    %v913 = vpop.f32.mrb[0].mxu0
    %v914 = vpop.f32.mrb[0].mxu0
    %v915 = vadd.f32 0.0, %v914
    %v916 = vpop.f32.mrb[0].mxu0
    %917 = vdwg.mxu0
    %v919 = vsel %vm267, %v771, 0
    %v922 = vsel %vm779, %v775, 0
    %924 = vmatprep.subr.bf16.mxu0 0
    %925 = vmatpush1.bf16.msra.mxu0 %v922
    %926 = vmatprep.subr.bf16.mxu0 0
    %927 = vmatpush1.bf16.msra.mxu0 0
    %928 = vmatprep.subr.bf16.mxu0 0
    %929 = vmatpush1.bf16.msra.mxu0 0
    %930 = vmatprep.subr.bf16.mxu0 0
    %931 = vmatpush1.bf16.msra.mxu0 0
    %932 = vmatprep.subr.bf16.mxu0 0
    %933 = vmatpush1.bf16.msra.mxu0 0
    %934 = vmatprep.subr.bf16.mxu0 0
    %935 = vmatpush1.bf16.msra.mxu0 0
    %936 = vmatprep.subr.bf16.mxu0 0
    %937 = vmatpush1.bf16.msra.mxu0 0
    %938 = vmatprep.subr.bf16.mxu0 0
    %939 = vmatpush1.bf16.msra.mxu0 0
    %940 = vmatprep.subr.bf16.mxu0 0
    %941 = vmatpush1.bf16.msra.mxu0 0
    %942 = vmatprep.subr.bf16.mxu0 0
    %943 = vmatpush1.bf16.msra.mxu0 0
    %944 = vmatprep.subr.bf16.mxu0 0
    %945 = vmatpush1.bf16.msra.mxu0 0
    %946 = vmatprep.subr.bf16.mxu0 0
    %947 = vmatpush1.bf16.msra.mxu0 0
    %948 = vmatprep.subr.bf16.mxu0 0
    %949 = vmatpush1.bf16.msra.mxu0 0
    %950 = vmatprep.subr.bf16.mxu0 0
    %951 = vmatpush1.bf16.msra.mxu0 0
    %952 = vmatprep.subr.bf16.mxu0 0
    %953 = vmatpush1.bf16.msra.mxu0 0
    %954 = vmatprep.subr.bf16.mxu0 0
    %955 = vmatpush1.bf16.msra.mxu0 0
    %956 = vmatprep.mubr.bf16.mxu0 0
    %957 = vmatmul.mubr.bf16.gmra.mrb[0].mxu0 %v919
    %v958 = vpop.f32.mrb[0].mxu0
    %v959 = vadd.f32 0.0, %v958
    %v960 = vpop.f32.mrb[0].mxu0
    %v961 = vpop.f32.mrb[0].mxu0
    %v962 = vadd.f32 0.0, %v961
    %v963 = vpop.f32.mrb[0].mxu0
    %964 = vdwg.mxu0
    %v965 = vsel %vm56, %v818, 0.0
    %v966 = vsel %vm56, %v865, 0.0
    %v967 = vadd.f32 %v965, %v966
    %v968 = vsel %vm56, %v912, 0.0
    %v969 = vadd.f32 %v967, %v968
    %v970 = vsel %vm56, %v959, 0.0
    %v971 = vadd.f32 %v969, %v970
    %v972 = vsel %vm56, %v821, 0.0
    %v973 = vsel %vm56, %v868, 0.0
    %v974 = vadd.f32 %v972, %v973
    %v975 = vsel %vm56, %v915, 0.0
    %v976 = vadd.f32 %v974, %v975
    %v977 = vsel %vm56, %v962, 0.0
    %v978 = vadd.f32 %v976, %v977
    %v979 = vld [vmem:[%s5] sm:$0x1]
    %v980 = vld [vmem:[%s5 + $0x1] sm:$0x1]
    %v981 = vld [vmem:[%s5 + $0x2] sm:$0x1]
    %v982 = vld [vmem:[%s5 + $0x3] sm:$0x1]
    %v983 = vld [vmem:[%s5 + $0x4] sm:$0x1]
    %v984 = vld [vmem:[%s5 + $0x5] sm:$0x1]
    %v985 = vadd.f32 %v25, %v971
    %v986 = vadd.f32 %v26, %v978
    %v987 = vsel %vm56, %v985, 0.0
    %988 = vadd.xlane.f32.xlu0 %v987
    %v989 = vpop.xlane.xlu0 %988
    %v990 = vsel %vm56, %v986, 0.0
    %991 = vadd.xlane.f32.xlu0 %v990
    %v992 = vpop.xlane.xlu0 %991
    %v993 = vrcp.pop 32.0
    %v994 = vmul.f32 %v989, %v993
    %v995 = vmul.f32 %v992, %v993
    %v996 = vsub.f32 %v985, %v994
    %v997 = vsub.f32 %v986, %v995
    %v998 = vmul.f32 %v996, %v996
    %v999 = vmul.f32 %v997, %v997
    %v1000 = vsel %vm56, %v998, 0.0
    %1001 = vadd.xlane.f32.xlu0 %v1000
    %v1002 = vpop.xlane.xlu0 %1001
    %v1003 = vsel %vm56, %v999, 0.0
    %1004 = vadd.xlane.f32.xlu0 %v1003
    %v1005 = vpop.xlane.xlu0 %1004
    %v1006 = vmul.f32 %v1002, %v993
    %v1007 = vmul.f32 %v1005, %v993
    %v1008 = vadd.f32 %v1006, 1e-05
    %v1009 = vadd.f32 %v1007, 1e-05
    %v1010 = vrsqrt.pop %v1008
    %v1011 = vrsqrt.pop %v1009
    %v1012 = vmul.f32 %v996, %v1010
    %v1013 = vmul.f32 %v997, %v1011
    %v1014 = vlaneseq
    %v1015 = vshrl.u32 %v1014, 7
    %v1016 = vsub.s32 0, %v1015
    %v1017 = vrot.slane %v979, %v1016
    %v1018 = vmul.f32 %v1012, %v1017
    %v1019 = vmul.f32 %v1013, %v1017
    %v1020 = vlaneseq
    %v1021 = vshrl.u32 %v1020, 7
    %v1022 = vsub.s32 0, %v1021
    %v1023 = vrot.slane %v980, %v1022
    %v1024 = vadd.f32 %v1018, %v1023
    %v1025 = vadd.f32 %v1019, %v1023
    %v1026 = vpack.c.bf16 %v1025, %v1024
    %v1027 = vld [vmem:[%s3] sm:$0xf]
    %v1028 = vld [vmem:[%s3 + $0x4] sm:$0xf]
    %v1029 = vld [vmem:[%s3 + $0x8] sm:$0xf]
    %v1030 = vld [vmem:[%s3 + $0xc] sm:$0xf]
    %v1031 = vlaneseq
    %v1032 = vshrl.u32 %v1031, 7
    %v1033 = vsub.s32 0, %v1032
    %v1034 = vrot.slane %v983, %v1033
    %v1039 = vunpack.c.l.b16 %v1027
    %v1040 = vunpack.c.l.b16 %v1028
    %v1041 = vunpack.c.l.b16 %v1029
    %v1042 = vunpack.c.l.b16 %v1030
    %v1043 = vpack.c.b16 %v1040, %v1039
    %v1044 = vpack.c.b16 %v1042, %v1041
    %v1048 = vsel %vm56, %v1026, 0
    %1050 = vmatprep.subr.bf16.mxu0 0
    %1051 = vmatpush1.bf16.msra.mxu0 %v1043
    %1052 = vmatprep.subr.bf16.mxu0 0
    %1053 = vmatpush1.bf16.msra.mxu0 %v1044
    %1054 = vmatprep.subr.bf16.mxu0 0
    %1055 = vmatpush1.bf16.msra.mxu0 0
    %1056 = vmatprep.subr.bf16.mxu0 0
    %1057 = vmatpush1.bf16.msra.mxu0 0
    %1058 = vmatprep.subr.bf16.mxu0 0
    %1059 = vmatpush1.bf16.msra.mxu0 0
    %1060 = vmatprep.subr.bf16.mxu0 0
    %1061 = vmatpush1.bf16.msra.mxu0 0
    %1062 = vmatprep.subr.bf16.mxu0 0
    %1063 = vmatpush1.bf16.msra.mxu0 0
    %1064 = vmatprep.subr.bf16.mxu0 0
    %1065 = vmatpush1.bf16.msra.mxu0 0
    %1066 = vmatprep.subr.bf16.mxu0 0
    %1067 = vmatpush1.bf16.msra.mxu0 0
    %1068 = vmatprep.subr.bf16.mxu0 0
    %1069 = vmatpush1.bf16.msra.mxu0 0
    %1070 = vmatprep.subr.bf16.mxu0 0
    %1071 = vmatpush1.bf16.msra.mxu0 0
    %1072 = vmatprep.subr.bf16.mxu0 0
    %1073 = vmatpush1.bf16.msra.mxu0 0
    %1074 = vmatprep.subr.bf16.mxu0 0
    %1075 = vmatpush1.bf16.msra.mxu0 0
    %1076 = vmatprep.subr.bf16.mxu0 0
    %1077 = vmatpush1.bf16.msra.mxu0 0
    %1078 = vmatprep.subr.bf16.mxu0 0
    %1079 = vmatpush1.bf16.msra.mxu0 0
    %1080 = vmatprep.subr.bf16.mxu0 0
    %1081 = vmatpush1.bf16.msra.mxu0 0
    %1082 = vmatprep.mubr.bf16.mxu0 0
    %1083 = vmatmul.mubr.bf16.gmra.mrb[0].mxu0 %v1048
    %v1084 = vpop.f32.mrb[0].mxu0
    %v1085 = vadd.f32 %v1034, %v1084
    %v1086 = vpop.f32.mrb[0].mxu0
    %v1087 = vpop.f32.mrb[0].mxu0
    %v1088 = vadd.f32 %v1034, %v1087
    %v1089 = vpop.f32.mrb[0].mxu0
    %1090 = vdwg.mxu0
    %v1091 = vmul.f32 %v1085, 0.5
    %v1092 = vmul.f32 %v1088, 0.5
    %v1093 = vmul.f32 %v1085, 0.70710677
    %v1094 = vmul.f32 %v1088, 0.70710677
    %v1095 = verf.f32.pop %v1093
    %v1096 = verf.f32.pop %v1094
    %v1097 = vadd.f32 %v1095, 1.0
    %v1098 = vadd.f32 %v1096, 1.0
    %v1099 = vmul.f32 %v1091, %v1097
    %v1100 = vmul.f32 %v1092, %v1098
    %v1101 = vpack.c.bf16 %v1100, %v1099
    %v1102 = vld [vmem:[%s4] sm:$0xf]
    %v1103 = vld [vmem:[%s4 + $0x4] sm:$0xf]
    %v1104 = vld [vmem:[%s4 + $0x8] sm:$0xf]
    %v1105 = vld [vmem:[%s4 + $0xc] sm:$0xf]
    %v1106 = vld [vmem:[%s4 + $0x10] sm:$0xf]
    %v1107 = vld [vmem:[%s4 + $0x14] sm:$0xf]
    %v1108 = vld [vmem:[%s4 + $0x18] sm:$0xf]
    %v1109 = vld [vmem:[%s4 + $0x1c] sm:$0xf]
    %v1110 = vlaneseq
    %v1111 = vshrl.u32 %v1110, 7
    %v1112 = vsub.s32 0, %v1111
    %v1113 = vrot.slane %v984, %v1112
    %v1122 = vunpack.c.l.b16 %v1102
    %v1123 = vunpack.c.l.b16 %v1103
    %v1124 = vunpack.c.l.b16 %v1104
    %v1125 = vunpack.c.l.b16 %v1105
    %v1126 = vunpack.c.l.b16 %v1106
    %v1127 = vunpack.c.l.b16 %v1107
    %v1128 = vunpack.c.l.b16 %v1108
    %v1129 = vunpack.c.l.b16 %v1109
    %v1130 = vpack.c.b16 %v1123, %v1122
    %v1131 = vpack.c.b16 %v1125, %v1124
    %v1132 = vpack.c.b16 %v1127, %v1126
    %v1133 = vpack.c.b16 %v1129, %v1128
    %vm1138 = vcmask 523264
    %v1140 = vsel %vm1138, %v1101, 0
    %1142 = vmatprep.subr.bf16.mxu0 0
    %1143 = vmatpush1.bf16.msra.mxu0 %v1130
    %1144 = vmatprep.subr.bf16.mxu0 0
    %1145 = vmatpush1.bf16.msra.mxu0 %v1131
    %1146 = vmatprep.subr.bf16.mxu0 0
    %1147 = vmatpush1.bf16.msra.mxu0 %v1132
    %1148 = vmatprep.subr.bf16.mxu0 0
    %1149 = vmatpush1.bf16.msra.mxu0 %v1133
    %1150 = vmatprep.subr.bf16.mxu0 0
    %1151 = vmatpush1.bf16.msra.mxu0 0
    %1152 = vmatprep.subr.bf16.mxu0 0
    %1153 = vmatpush1.bf16.msra.mxu0 0
    %1154 = vmatprep.subr.bf16.mxu0 0
    %1155 = vmatpush1.bf16.msra.mxu0 0
    %1156 = vmatprep.subr.bf16.mxu0 0
    %1157 = vmatpush1.bf16.msra.mxu0 0
    %1158 = vmatprep.subr.bf16.mxu0 0
    %1159 = vmatpush1.bf16.msra.mxu0 0
    %1160 = vmatprep.subr.bf16.mxu0 0
    %1161 = vmatpush1.bf16.msra.mxu0 0
    %1162 = vmatprep.subr.bf16.mxu0 0
    %1163 = vmatpush1.bf16.msra.mxu0 0
    %1164 = vmatprep.subr.bf16.mxu0 0
    %1165 = vmatpush1.bf16.msra.mxu0 0
    %1166 = vmatprep.subr.bf16.mxu0 0
    %1167 = vmatpush1.bf16.msra.mxu0 0
    %1168 = vmatprep.subr.bf16.mxu0 0
    %1169 = vmatpush1.bf16.msra.mxu0 0
    %1170 = vmatprep.subr.bf16.mxu0 0
    %1171 = vmatpush1.bf16.msra.mxu0 0
    %1172 = vmatprep.subr.bf16.mxu0 0
    %1173 = vmatpush1.bf16.msra.mxu0 0
    %1174 = vmatprep.mubr.bf16.mxu0 0
    %1175 = vmatmul.mubr.bf16.gmra.mrb[0].mxu0 %v1140
    %v1176 = vpop.f32.mrb[0].mxu0
    %v1177 = vadd.f32 %v1113, %v1176
    %v1178 = vpop.f32.mrb[0].mxu0
    %v1179 = vpop.f32.mrb[0].mxu0
    %v1180 = vadd.f32 %v1113, %v1179
    %v1181 = vpop.f32.mrb[0].mxu0
    %1182 = vdwg.mxu0
    %v1183 = vadd.f32 %v1024, %v1177
    %v1184 = vadd.f32 %v1025, %v1180
    %v1185 = vsel %vm56, %v1183, 0.0
    %1186 = vadd.xlane.f32.xlu0 %v1185
    %v1187 = vpop.xlane.xlu0 %1186
    %v1188 = vsel %vm56, %v1184, 0.0
    %1189 = vadd.xlane.f32.xlu0 %v1188
    %v1190 = vpop.xlane.xlu0 %1189
    %v1191 = vmul.f32 %v1187, %v993
    %v1192 = vmul.f32 %v1190, %v993
    %v1193 = vsub.f32 %v1183, %v1191
    %v1194 = vsub.f32 %v1184, %v1192
    %v1195 = vmul.f32 %v1193, %v1193
    %v1196 = vmul.f32 %v1194, %v1194
    %v1197 = vsel %vm56, %v1195, 0.0
    %1198 = vadd.xlane.f32.xlu0 %v1197
    %v1199 = vpop.xlane.xlu0 %1198
    %v1200 = vsel %vm56, %v1196, 0.0
    %1201 = vadd.xlane.f32.xlu0 %v1200
    %v1202 = vpop.xlane.xlu0 %1201
    %v1203 = vmul.f32 %v1199, %v993
    %v1204 = vmul.f32 %v1202, %v993
    %v1205 = vadd.f32 %v1203, 1e-05
    %v1206 = vadd.f32 %v1204, 1e-05
    %v1207 = vrsqrt.pop %v1205
    %v1208 = vrsqrt.pop %v1206
    %v1209 = vmul.f32 %v1193, %v1207
    %v1210 = vmul.f32 %v1194, %v1208
    %v1211 = vlaneseq
    %v1212 = vshrl.u32 %v1211, 7
    %v1213 = vsub.s32 0, %v1212
    %v1214 = vrot.slane %v981, %v1213
    %v1215 = vmul.f32 %v1209, %v1214
    %v1216 = vmul.f32 %v1210, %v1214
    %v1217 = vlaneseq
    %v1218 = vshrl.u32 %v1217, 7
    %v1219 = vsub.s32 0, %v1218
    %v1220 = vrot.slane %v982, %v1219
    %v1221 = vadd.f32 %v1215, %v1220
    %v1222 = vadd.f32 %v1216, %v1220
    %1223 = vst.msk [vmem:[#allocation2] sm:$0xff] %vm56, %v1221
    %1224 = vst.msk [vmem:[#allocation2 + $0x8] sm:$0xff] %vm56, %v1222
    // Predicated region
    $region26: #{tpu_custom_call.1} parent=1 // pred_check
      _
    $region27: #{tpu_custom_call.1} parent=1 // pred_check_branch
      %1226 = sbr.rel (0) target = $region29
    $region28: #{tpu_custom_call.1} parent=1 // pred_region
      %s1228 = ssub.s32 256, 256
      %1229 = vsyncadd [#allocation3], %s1228
      %s1230 = sshll.u32 [#allocation2], 4
      %s1231 = int_to_ptr.vmem [resolvable:$true] %s1230
      %1236 = dma.vmem_to_hbm [thread:$0]  %s1231, 256, %s6, [#allocation3], 128, 128, 8
    $region29: #{tpu_custom_call.1} parent=1 // pred_fallthru
      _
    // Predicated region
    $region30: #{tpu_custom_call.1} parent=1 // pred_check
      _
    $region31: #{tpu_custom_call.1} parent=1 // pred_check_branch
      %1238 = sbr.rel (0) target = $region33
    $region32: #{tpu_custom_call.1} parent=1 // pred_region
      %1239 = dma.done [#allocation3], 256
    $region33: #{tpu_custom_call.1} parent=1 // pred_fallthru
      _
    %1240 = vsyncpa [#allocation3], 1

</llo_original>
